<compile_context>
chip_gen: v7x
topology: tpu7x:2x2x1
jax: 0.10.0
libtpu: 0.0.40
codegen_flags: <defaults>
</compile_context>

<pallas_src>
import functools

import jax
import jax.numpy as jnp
from jax.experimental import pallas as pl
from jax.experimental.pallas import tpu as pltpu


def _round_up(n, m):
    return ((n + m - 1) // m) * m


def _pad2d(a, rows, cols):
    return jnp.pad(a, ((0, rows - a.shape[0]), (0, cols - a.shape[1])))


def _autoencoder_kernel(
    x_ref,
    w1_ref, b1_ref,
    w2_ref, b2_ref,
    w3p_ref, b3p_ref,   # fused [w3 | wp], [b3 | bp]
    w4_ref, b4_ref,
    x3_ref, emb_ref, pred_ref,
    *, h1_pad,
):
    bf16 = jnp.bfloat16
    f32 = jnp.float32

    # x arrives as f32 (no separate wrapper cast pass); cast to bf16 on the
    # VPU, hidden under the block DMA.
    x = x_ref[...].astype(bf16)

    # l1 -> relu -> dropout (identity in eval mode)
    # TODO(synk): training-mode dropout (stochastic mask) not reproduced; eval semantics used.
    h1 = jnp.maximum(
        jnp.dot(x, w1_ref[...], preferred_element_type=f32) + b1_ref[...], 0.0)

    # l2 -> relu  (embedding); bf16 MXU operands, f32 accumulate.
    emb = jnp.maximum(
        jnp.dot(h1.astype(bf16), w2_ref[...], preferred_element_type=f32) + b2_ref[...], 0.0)

    # Fused l3 + lpredict: one matmul on the shared embedding LHS, then split
    # columns (split point h1_pad is a 128 multiple -> lane-aligned slices).
    fused = (jnp.dot(emb.astype(bf16), w3p_ref[...], preferred_element_type=f32)
             + b3p_ref[...])
    h2 = jnp.maximum(fused[:, :h1_pad], 0.0)   # l3 -> relu
    pred = fused[:, h1_pad:]                   # lpredict (no activation)

    # l4 (no activation)
    x3 = (jnp.dot(h2.astype(bf16), w4_ref[...], preferred_element_type=f32)
          + b4_ref[...])

    x3_ref[...] = x3.astype(x3_ref.dtype)
    emb_ref[...] = emb.astype(emb_ref.dtype)
    pred_ref[...] = pred.astype(pred_ref.dtype)


def prepare_params(params):
    """One-time weight prep: 128-lane padding, bf16 cast, l3+lpredict fusion.

    Call once; the result is reused by every autoencoder_forward() call so the
    padded/casted weights live in HBM already in kernel layout and are DMA'd
    into VMEM once per call via constant-index_map (resident) BlockSpecs.
    Zero padding is numerically exact (padded lanes stay 0 through relu).
    """
    bf16 = jnp.bfloat16
    f32 = jnp.float32

    in_fea, h1 = params["w1"].shape
    latent = params["w2"].shape[1]
    d_out = params["wp"].shape[1]

    in_p = _round_up(in_fea, 128)
    h1_p = _round_up(h1, 128)
    lat_p = _round_up(latent, 128)
    do_p = _round_up(d_out, 128)

    return dict(
        # w1 keeps its true K (= in_fea) so the activation input x never needs
        # feature padding; all other K/N dims padded to 128-lane multiples.
        w1=_pad2d(params["w1"], in_fea, h1_p).astype(bf16),
        b1=_pad2d(params["b1"], 1, h1_p).astype(f32),
        w2=_pad2d(params["w2"], h1_p, lat_p).astype(bf16),
        b2=_pad2d(params["b2"], 1, lat_p).astype(f32),
        w3p=jnp.concatenate(
            [_pad2d(params["w3"], lat_p, h1_p),
             _pad2d(params["wp"], lat_p, do_p)], axis=1).astype(bf16),
        b3p=jnp.concatenate(
            [_pad2d(params["b3"], 1, h1_p),
             _pad2d(params["bp"], 1, do_p)], axis=1).astype(f32),
        w4=_pad2d(params["w4"], h1_p, in_p).astype(bf16),
        b4=_pad2d(params["b4"], 1, in_p).astype(f32),
        # Static dims (Python ints) for grid setup / output trimming.
        in_fea=in_fea, h1=h1, latent=latent, d_out=d_out,
        in_p=in_p, h1_p=h1_p, lat_p=lat_p, do_p=do_p,
    )


def autoencoder_forward(x, prep, *, block_b=512):
    """(x3, embedding, xpredict) = AutoEncoder.forward(x), eval semantics.

    x: (B, in_fea) float32.  prep: output of prepare_params().
    Returns float32 arrays of shapes (B, in_fea), (B, latent), (B, d_output).
    """
    B, in_fea = x.shape
    assert in_fea == prep["in_fea"], "x feature dim does not match params"
    bf16 = jnp.bfloat16
    f32 = jnp.float32

    in_p, h1_p, lat_p, do_p = prep["in_p"], prep["h1_p"], prep["lat_p"], prep["do_p"]

    # Batch tile: large to amortize the ~0.35us/step overhead and reach the
    # HBM roofline, but capped so the grid always has >= 2 steps (megacore
    # sharding on v7x + active double-buffered pipelining).
    block_b = max(8, min(block_b, _round_up(pl.cdiv(B, 2), 8)))
    B_p = max(_round_up(B, block_b), 2 * block_b)
    x_p = x if B_p == B else jnp.pad(x, ((0, B_p - B), (0, 0)))

    grid = (B_p // block_b,)

    # Constant index_map -> block never changes -> weights/biases stay
    # VMEM-resident across grid steps (single DMA each).
    def resident(a):
        return pl.BlockSpec(a.shape, lambda i: (0,) * a.ndim)

    kernel = functools.partial(_autoencoder_kernel, h1_pad=h1_p)

    out_shapes = (
        jax.ShapeDtypeStruct((B_p, in_p), bf16),    # x3 (padded, bf16 writeback)
        jax.ShapeDtypeStruct((B_p, lat_p), bf16),   # embedding
        jax.ShapeDtypeStruct((B_p, do_p), bf16),    # xpredict
    )

    x3_p, emb_p, pred_p = pl.pallas_call(
        kernel,
        out_shape=out_shapes,
        grid=grid,
        in_specs=[
            # x streams in f32 at its true feature width (== full array dim).
            pl.BlockSpec((block_b, in_fea), lambda i: (i, 0)),
            resident(prep["w1"]), resident(prep["b1"]),
            resident(prep["w2"]), resident(prep["b2"]),
            resident(prep["w3p"]), resident(prep["b3p"]),
            resident(prep["w4"]), resident(prep["b4"]),
        ],
        out_specs=(
            pl.BlockSpec((block_b, in_p), lambda i: (i, 0)),
            pl.BlockSpec((block_b, lat_p), lambda i: (i, 0)),
            pl.BlockSpec((block_b, do_p), lambda i: (i, 0)),
        ),
        compiler_params=pltpu.CompilerParams(
            dimension_semantics=("parallel",),
        ),
    )(x_p, prep["w1"], prep["b1"], prep["w2"], prep["b2"],
      prep["w3p"], prep["b3p"], prep["w4"], prep["b4"])

    # Trim batch/feature padding and up-cast to f32 in one fused slice+convert.
    x3 = x3_p[:B, :prep["in_fea"]].astype(f32)
    emb = emb_p[:B, :prep["latent"]].astype(f32)
    pred = pred_p[:B, :prep["d_out"]].astype(f32)
    return x3, emb, pred


def init_params(key, in_fea, h1, latent_size, d_output):
    """Deterministic init mimicking nn.Linear default (uniform +-1/sqrt(fan_in))."""
    def linear(k, fan_in, fan_out):
        kw, kb = jax.random.split(k)
        bound = 1.0 / jnp.sqrt(jnp.float32(fan_in))
        w = jax.random.uniform(kw, (fan_in, fan_out), jnp.float32, -bound, bound)
        b = jax.random.uniform(kb, (1, fan_out), jnp.float32, -bound, bound)
        return w, b

    k1, k2, k3, k4, k5 = jax.random.split(key, 5)
    w1, b1 = linear(k1, in_fea, h1)
    w2, b2 = linear(k2, h1, latent_size)
    w3, b3 = linear(k3, latent_size, h1)
    w4, b4 = linear(k4, h1, in_fea)
    wp, bp = linear(k5, latent_size, d_output)
    return dict(w1=w1, b1=b1, w2=w2, b2=b2, w3=w3, b3=b3, w4=w4, b4=b4, wp=wp, bp=bp)


def reference_forward(x, p):
    """Pure-JAX reference mirroring the kernel's bf16-operand / f32-accumulate
    math, including the bf16 output writeback."""
    bf16 = jnp.bfloat16
    f32 = jnp.float32

    def mm(a, w):
        return jnp.dot(a.astype(bf16), w.astype(bf16), preferred_element_type=f32)

    h1 = jax.nn.relu(mm(x, p["w1"]) + p["b1"])
    emb = jax.nn.relu(mm(h1, p["w2"]) + p["b2"])
    h2 = jax.nn.relu(mm(emb, p["w3"]) + p["b3"])
    x3 = mm(h2, p["w4"]) + p["b4"]
    pred = mm(emb, p["wp"]) + p["bp"]
    rnd = lambda t: t.astype(bf16).astype(f32)
    return rnd(x3), rnd(emb), rnd(pred)


if __name__ == "__main__":
    # Small, module-consistent shapes.
    B, in_fea, h1, latent_size, d_output = 8, 32, 64, 16, 8

    key = jax.random.PRNGKey(0)
    kx, kp = jax.random.split(key)
    x = jax.random.normal(kx, (B, in_fea), jnp.float32)
    params = init_params(kp, in_fea, h1, latent_size, d_output)

    # One-time weight preparation (pad / cast / fuse), reused across calls.
    prep = prepare_params(params)

    x3, emb, pred = autoencoder_forward(x, prep, block_b=512)
    jax.block_until_ready((x3, emb, pred))

    # Sanity check against a bf16-matched pure-JAX reference.
    rx3, remb, rpred = reference_forward(x, params)
    assert x3.shape == (B, in_fea) and emb.shape == (B, latent_size) and pred.shape == (B, d_output)
    assert jnp.allclose(x3, rx3, atol=2e-2, rtol=2e-2), "x3 mismatch"
    assert jnp.allclose(emb, remb, atol=2e-2, rtol=2e-2), "embedding mismatch"
    assert jnp.allclose(pred, rpred, atol=2e-2, rtol=2e-2), "xpredict mismatch"

    print("KERNEL_OK")
</pallas_src>

<mosaic_0001>
module attributes {stable_mosaic.version = 11 : i64} {
  func.func @_autoencoder_kernel(%arg0: i32, %arg1: memref<8x32xf32, #tpu.memory_space<vmem>>, %arg2: memref<32x128xbf16, #tpu.memory_space<vmem>>, %arg3: memref<1x128xf32, #tpu.memory_space<vmem>>, %arg4: memref<128x128xbf16, #tpu.memory_space<vmem>>, %arg5: memref<1x128xf32, #tpu.memory_space<vmem>>, %arg6: memref<128x256xbf16, #tpu.memory_space<vmem>>, %arg7: memref<1x256xf32, #tpu.memory_space<vmem>>, %arg8: memref<128x128xbf16, #tpu.memory_space<vmem>>, %arg9: memref<1x128xf32, #tpu.memory_space<vmem>>, %arg10: memref<8x128xbf16, #tpu.memory_space<vmem>>, %arg11: memref<8x128xbf16, #tpu.memory_space<vmem>>, %arg12: memref<8x128xbf16, #tpu.memory_space<vmem>>) attributes {dimension_semantics = [#tpu.dimension_semantics<parallel>], iteration_bounds = array<i64: 2>, scalar_prefetch = 0 : i64, scratch_operands = 0 : i64, tpu.core_type = #tpu.core_type<tc>, window_params = [{transform_indices = @transform_0, window_bounds = array<i64: 8, 32>}, {pipeline_mode = #tpu.pipeline_mode<synchronous>, transform_indices = @transform_1, window_bounds = array<i64: 32, 128>}, {pipeline_mode = #tpu.pipeline_mode<synchronous>, transform_indices = @transform_2, window_bounds = array<i64: 1, 128>}, {pipeline_mode = #tpu.pipeline_mode<synchronous>, transform_indices = @transform_3, window_bounds = array<i64: 128, 128>}, {pipeline_mode = #tpu.pipeline_mode<synchronous>, transform_indices = @transform_4, window_bounds = array<i64: 1, 128>}, {pipeline_mode = #tpu.pipeline_mode<synchronous>, transform_indices = @transform_5, window_bounds = array<i64: 128, 256>}, {pipeline_mode = #tpu.pipeline_mode<synchronous>, transform_indices = @transform_6, window_bounds = array<i64: 1, 256>}, {pipeline_mode = #tpu.pipeline_mode<synchronous>, transform_indices = @transform_7, window_bounds = array<i64: 128, 128>}, {pipeline_mode = #tpu.pipeline_mode<synchronous>, transform_indices = @transform_8, window_bounds = array<i64: 1, 128>}, {transform_indices = @transform_9, window_bounds = array<i64: 8, 128>}, {transform_indices = @transform_10, window_bounds = array<i64: 8, 128>}, {transform_indices = @transform_11, window_bounds = array<i64: 8, 128>}]} {
    %c0 = arith.constant 0 : index
    %c0_0 = arith.constant 0 : index
    %0 = vector.load %arg1[%c0, %c0_0] : memref<8x32xf32, #tpu.memory_space<vmem>>, vector<8x32xf32>
    %1 = arith.truncf %0 : vector<8x32xf32> to vector<8x32xbf16>
    %c0_1 = arith.constant 0 : index
    %c0_2 = arith.constant 0 : index
    %2 = vector.load %arg2[%c0_1, %c0_2] : memref<32x128xbf16, #tpu.memory_space<vmem>>, vector<32x128xbf16>
    %cst = arith.constant dense<0.000000e+00> : vector<8x128xf32>
    %3 = tpu.matmul %1, %2, %cst {dimension_numbers = #tpu.dot_dimension_numbers<[1], [0], [0], [1], [0, 0, 1, 1], [], []>} : vector<8x32xbf16>, vector<32x128xbf16>, vector<8x128xf32> -> vector<8x128xf32>
    %c0_3 = arith.constant 0 : index
    %c0_4 = arith.constant 0 : index
    %4 = vector.load %arg3[%c0_3, %c0_4] : memref<1x128xf32, #tpu.memory_space<vmem>>, vector<1x128xf32>
    %5 = vector.broadcast %4 : vector<1x128xf32> to vector<8x128xf32>
    %6 = arith.addf %3, %5 : vector<8x128xf32>
    %cst_5 = arith.constant 0.000000e+00 : f32
    %7 = vector.broadcast %cst_5 : f32 to vector<8x128xf32>
    %8 = arith.maximumf %6, %7 : vector<8x128xf32>
    %9 = arith.truncf %8 : vector<8x128xf32> to vector<8x128xbf16>
    %c0_6 = arith.constant 0 : index
    %c0_7 = arith.constant 0 : index
    %10 = vector.load %arg4[%c0_6, %c0_7] : memref<128x128xbf16, #tpu.memory_space<vmem>>, vector<128x128xbf16>
    %cst_8 = arith.constant dense<0.000000e+00> : vector<8x128xf32>
    %11 = tpu.matmul %9, %10, %cst_8 {dimension_numbers = #tpu.dot_dimension_numbers<[1], [0], [0], [1], [0, 0, 1, 1], [], []>} : vector<8x128xbf16>, vector<128x128xbf16>, vector<8x128xf32> -> vector<8x128xf32>
    %c0_9 = arith.constant 0 : index
    %c0_10 = arith.constant 0 : index
    %12 = vector.load %arg5[%c0_9, %c0_10] : memref<1x128xf32, #tpu.memory_space<vmem>>, vector<1x128xf32>
    %13 = vector.broadcast %12 : vector<1x128xf32> to vector<8x128xf32>
    %14 = arith.addf %11, %13 : vector<8x128xf32>
    %cst_11 = arith.constant 0.000000e+00 : f32
    %15 = vector.broadcast %cst_11 : f32 to vector<8x128xf32>
    %16 = arith.maximumf %14, %15 : vector<8x128xf32>
    %17 = arith.truncf %16 : vector<8x128xf32> to vector<8x128xbf16>
    %c0_12 = arith.constant 0 : index
    %c0_13 = arith.constant 0 : index
    %18 = vector.load %arg6[%c0_12, %c0_13] : memref<128x256xbf16, #tpu.memory_space<vmem>>, vector<128x256xbf16>
    %cst_14 = arith.constant dense<0.000000e+00> : vector<8x256xf32>
    %19 = tpu.matmul %17, %18, %cst_14 {dimension_numbers = #tpu.dot_dimension_numbers<[1], [0], [0], [1], [0, 0, 1, 1], [], []>} : vector<8x128xbf16>, vector<128x256xbf16>, vector<8x256xf32> -> vector<8x256xf32>
    %c0_15 = arith.constant 0 : index
    %c0_16 = arith.constant 0 : index
    %20 = vector.load %arg7[%c0_15, %c0_16] : memref<1x256xf32, #tpu.memory_space<vmem>>, vector<1x256xf32>
    %21 = vector.broadcast %20 : vector<1x256xf32> to vector<8x256xf32>
    %22 = arith.addf %19, %21 : vector<8x256xf32>
    %23 = vector.extract_strided_slice %22 {offsets = [0, 0], sizes = [8, 128], strides = [1, 1]} : vector<8x256xf32> to vector<8x128xf32>
    %cst_17 = arith.constant 0.000000e+00 : f32
    %24 = vector.broadcast %cst_17 : f32 to vector<8x128xf32>
    %25 = arith.maximumf %23, %24 : vector<8x128xf32>
    %26 = vector.extract_strided_slice %22 {offsets = [0, 128], sizes = [8, 128], strides = [1, 1]} : vector<8x256xf32> to vector<8x128xf32>
    %27 = arith.truncf %25 : vector<8x128xf32> to vector<8x128xbf16>
    %c0_18 = arith.constant 0 : index
    %c0_19 = arith.constant 0 : index
    %28 = vector.load %arg8[%c0_18, %c0_19] : memref<128x128xbf16, #tpu.memory_space<vmem>>, vector<128x128xbf16>
    %cst_20 = arith.constant dense<0.000000e+00> : vector<8x128xf32>
    %29 = tpu.matmul %27, %28, %cst_20 {dimension_numbers = #tpu.dot_dimension_numbers<[1], [0], [0], [1], [0, 0, 1, 1], [], []>} : vector<8x128xbf16>, vector<128x128xbf16>, vector<8x128xf32> -> vector<8x128xf32>
    %c0_21 = arith.constant 0 : index
    %c0_22 = arith.constant 0 : index
    %30 = vector.load %arg9[%c0_21, %c0_22] : memref<1x128xf32, #tpu.memory_space<vmem>>, vector<1x128xf32>
    %31 = vector.broadcast %30 : vector<1x128xf32> to vector<8x128xf32>
    %32 = arith.addf %29, %31 : vector<8x128xf32>
    %33 = arith.truncf %32 : vector<8x128xf32> to vector<8x128xbf16>
    %c0_23 = arith.constant 0 : index
    %c0_24 = arith.constant 0 : index
    %34 = vector.load %arg10[%c0_23, %c0_24] : memref<8x128xbf16, #tpu.memory_space<vmem>>, vector<8x128xbf16>
    tpu.vector_store %arg10[%c0_23, %c0_24], %33 {strides = array<i32>} : memref<8x128xbf16, #tpu.memory_space<vmem>>, vector<8x128xbf16>,
    %35 = arith.truncf %16 : vector<8x128xf32> to vector<8x128xbf16>
    %c0_25 = arith.constant 0 : index
    %c0_26 = arith.constant 0 : index
    %36 = vector.load %arg11[%c0_25, %c0_26] : memref<8x128xbf16, #tpu.memory_space<vmem>>, vector<8x128xbf16>
    tpu.vector_store %arg11[%c0_25, %c0_26], %35 {strides = array<i32>} : memref<8x128xbf16, #tpu.memory_space<vmem>>, vector<8x128xbf16>,
    %37 = arith.truncf %26 : vector<8x128xf32> to vector<8x128xbf16>
    %c0_27 = arith.constant 0 : index
    %c0_28 = arith.constant 0 : index
    %38 = vector.load %arg12[%c0_27, %c0_28] : memref<8x128xbf16, #tpu.memory_space<vmem>>, vector<8x128xbf16>
    tpu.vector_store %arg12[%c0_27, %c0_28], %37 {strides = array<i32>} : memref<8x128xbf16, #tpu.memory_space<vmem>>, vector<8x128xbf16>,
    return
  }
  func.func @transform_0(%arg0: i32) -> (i32, i32) {
    %c0_i32 = arith.constant 0 : i32
    %c0_i32_0 = arith.constant 0 : i32
    return %arg0, %c0_i32 : i32, i32
  }
  func.func @transform_1(%arg0: i32) -> (i32, i32) {
    %c0_i32 = arith.constant 0 : i32
    %c0_i32_0 = arith.constant 0 : i32
    %c0_i32_1 = arith.constant 0 : i32
    return %c0_i32, %c0_i32_0 : i32, i32
  }
  func.func @transform_2(%arg0: i32) -> (i32, i32) {
    %c0_i32 = arith.constant 0 : i32
    %c0_i32_0 = arith.constant 0 : i32
    %c0_i32_1 = arith.constant 0 : i32
    return %c0_i32, %c0_i32_0 : i32, i32
  }
  func.func @transform_3(%arg0: i32) -> (i32, i32) {
    %c0_i32 = arith.constant 0 : i32
    %c0_i32_0 = arith.constant 0 : i32
    %c0_i32_1 = arith.constant 0 : i32
    return %c0_i32, %c0_i32_0 : i32, i32
  }
  func.func @transform_4(%arg0: i32) -> (i32, i32) {
    %c0_i32 = arith.constant 0 : i32
    %c0_i32_0 = arith.constant 0 : i32
    %c0_i32_1 = arith.constant 0 : i32
    return %c0_i32, %c0_i32_0 : i32, i32
  }
  func.func @transform_5(%arg0: i32) -> (i32, i32) {
    %c0_i32 = arith.constant 0 : i32
    %c0_i32_0 = arith.constant 0 : i32
    %c0_i32_1 = arith.constant 0 : i32
    return %c0_i32, %c0_i32_0 : i32, i32
  }
  func.func @transform_6(%arg0: i32) -> (i32, i32) {
    %c0_i32 = arith.constant 0 : i32
    %c0_i32_0 = arith.constant 0 : i32
    %c0_i32_1 = arith.constant 0 : i32
    return %c0_i32, %c0_i32_0 : i32, i32
  }
  func.func @transform_7(%arg0: i32) -> (i32, i32) {
    %c0_i32 = arith.constant 0 : i32
    %c0_i32_0 = arith.constant 0 : i32
    %c0_i32_1 = arith.constant 0 : i32
    return %c0_i32, %c0_i32_0 : i32, i32
  }
  func.func @transform_8(%arg0: i32) -> (i32, i32) {
    %c0_i32 = arith.constant 0 : i32
    %c0_i32_0 = arith.constant 0 : i32
    %c0_i32_1 = arith.constant 0 : i32
    return %c0_i32, %c0_i32_0 : i32, i32
  }
  func.func @transform_9(%arg0: i32) -> (i32, i32) {
    %c0_i32 = arith.constant 0 : i32
    %c0_i32_0 = arith.constant 0 : i32
    return %arg0, %c0_i32 : i32, i32
  }
  func.func @transform_10(%arg0: i32) -> (i32, i32) {
    %c0_i32 = arith.constant 0 : i32
    %c0_i32_0 = arith.constant 0 : i32
    return %arg0, %c0_i32 : i32, i32
  }
  func.func @transform_11(%arg0: i32) -> (i32, i32) {
    %c0_i32 = arith.constant 0 : i32
    %c0_i32_0 = arith.constant 0 : i32
    return %arg0, %c0_i32 : i32, i32
  }
}

</mosaic_0001>

<llo_original>
// kernel: tpu_custom_call.1
$region0: #{tpu_custom_call.1}
  #allocation0 [shape = 'u32[]', space=smem, size = 0x4, offset = 0x4, fixed_abs, tag = 'smem constant byte address 0x4 - core index']
  #allocation1 [shape = 'u32[144,128]{1,0:T(1,128)}', space=vmem, size = 0x12000, scoped, tag = 'internal scratch']
  %s0 = inlined_call_operand.hbm [shape: f32[16,32], index: 0, kind: input, shape index: {}]
  %s1 = inlined_call_operand.hbm [shape: bf16[32,128], index: 1, kind: input, shape index: {}]
  %s2 = inlined_call_operand.vmem [shape: f32[1,128], index: 2, kind: input, shape index: {}]
  %s3 = inlined_call_operand.hbm [shape: bf16[128,128], index: 3, kind: input, shape index: {}]
  %s4 = inlined_call_operand.vmem [shape: f32[1,128], index: 4, kind: input, shape index: {}]
  %s5 = inlined_call_operand.hbm [shape: bf16[128,256], index: 5, kind: input, shape index: {}]
  %s6 = inlined_call_operand.vmem [shape: f32[1,256], index: 6, kind: input, shape index: {}]
  %s7 = inlined_call_operand.hbm [shape: bf16[128,128], index: 7, kind: input, shape index: {}]
  %s8 = inlined_call_operand.vmem [shape: f32[1,128], index: 8, kind: input, shape index: {}]
  %s9 = inlined_call_operand.hbm [shape: bf16[16,128], index: 9, kind: output, shape index: {0}]
  %s10 = inlined_call_operand.hbm [shape: bf16[16,128], index: 10, kind: output, shape index: {1}]
  %s11 = inlined_call_operand.hbm [shape: bf16[16,128], index: 11, kind: output, shape index: {2}]
  %12 = xla_tuple %s9, %s10, %s11
  %s13 = sld [smem:[#allocation0]]
  $region105: #{tpu_custom_call.1} parent=0
    _
  %s15 = ssub.s32 1, %s13
  %s16 = scalar_select 0, %s15, %s13
  $region1: #{tpu_custom_call.1} parent=0
    #allocation2 [shape = 'u8[8192]{0}', space=vmem, size = 0x2000, scoped, tag = 'input window, operand 0']
    #allocation3 [shape = 's32[2]{0}', space=sflag, size = 0x8, scoped, tag = 'scoped memory for tpu_custom_call.1']
    #allocation4 [shape = 's32[2]{0}', space=sflag, size = 0x8, scoped, tag = 'scoped memory for tpu_custom_call.1']
    #allocation5 [shape = 'u8[8192]{0}', space=vmem, size = 0x2000, scoped, tag = 'input window, operand 1, single buffered']
    #allocation6 [shape = 's32[1]{0}', space=sflag, size = 0x4, scoped, tag = 'scoped memory for tpu_custom_call.1']
    #allocation7 [shape = 'u8[32768]{0}', space=vmem, size = 0x8000, scoped, tag = 'input window, operand 3, single buffered']
    #allocation8 [shape = 'u8[65536]{0}', space=vmem, size = 0x10000, scoped, tag = 'input window, operand 5, single buffered']
    #allocation9 [shape = 's32[1]{0}', space=sflag, size = 0x4, scoped, tag = 'scoped memory for tpu_custom_call.1']
    #allocation10 [shape = 'u8[32768]{0}', space=vmem, size = 0x8000, scoped, tag = 'input window, operand 7, single buffered']
    #allocation11 [shape = 'u8[4096]{0}', space=vmem, size = 0x1000, scoped, tag = 'output window, operand 0']
    #allocation12 [shape = 'u8[4096]{0}', space=vmem, size = 0x1000, scoped, tag = 'output window, operand 1']
    #allocation13 [shape = 's32[2]{0}', space=sflag, size = 0x8, scoped, tag = 'scoped memory for tpu_custom_call.1']
    #allocation14 [shape = 'u8[4096]{0}', space=vmem, size = 0x1000, scoped, tag = 'output window, operand 2']
    %17 = vsyncpa [#allocation3], 0
    %s18 = scalar_lea.sflag [#allocation3], 1
    %19 = vsyncpa %s18, 0
    %20 = vsyncpa [#allocation6], 0
    %21 = vsyncpa [#allocation9], 0
    %22 = vsyncpa [#allocation4], 0
    %s23 = scalar_lea.sflag [#allocation4], 1
    %24 = vsyncpa %s23, 0
    %25 = vsyncpa [#allocation13], 0
    %s26 = scalar_lea.sflag [#allocation13], 1
    %27 = vsyncpa %s26, 0
    loop: start=0, step=1, limit=4
    $region2: #{tpu_custom_call.1} parent=1 // loop_pre_header
      _
    $region3: #{tpu_custom_call.1} parent=1 // loop_header
      %s29 = sphi 0, %s33
      %p30 = scmp.ge.s32.totalorder %s29, 4
      %s39 = sphi 0, %s41
      %s42 = sphi 0, %s39
      %s43 = sphi 0, %s42
      %s59 = sphi 0, %s43
      %s63 = sphi 0, %s63
      %s65 = sphi 0, %s63
      %s66 = sphi 0, %s65
      %s80 = sphi 0, %s66
      %s84 = sphi 0, %s84
      %s86 = sphi 0, %s84
      %s87 = sphi 0, %s86
      %s101 = sphi 0, %s87
      %s105 = sphi 0, %s105
      %s107 = sphi 0, %s105
      %s108 = sphi 0, %s107
      %s122 = sphi 0, %s108
      %s126 = sphi 0, %s126
      %s128 = sphi 0, %s126
      %s129 = sphi 0, %s128
      %s143 = sphi 0, %s129
      %s147 = sphi 0, %s147
      %s149 = sphi 0, %s147
      %s150 = sphi 0, %s149
      %s164 = sphi 0, %s150
      %s168 = sphi 0, %s168
      %s170 = sphi 0, %s168
      %s171 = sphi 0, %s170
      %s185 = sphi 0, %s171
      %s189 = sphi 0, %s189
      %s191 = sphi 0, %s189
      %s192 = sphi 0, %s191
      %s206 = sphi 0, %s192
      %s210 = sphi 0, %s210
      %s212 = sphi 0, %s210
      %s213 = sphi 0, %s212
      %s227 = sphi 0, %s213
      %s233 = sphi 0, %s235
      %s236 = sphi 0, %s233
      %s237 = sphi 0, %s236
      %s253 = sphi 0, %s237
      %s259 = sphi 0, %s261
      %s262 = sphi 0, %s259
      %s263 = sphi 0, %s262
      %s279 = sphi 0, %s263
      %s285 = sphi 0, %s287
      %s288 = sphi 0, %s285
      %s289 = sphi 0, %s288
      %s305 = sphi 0, %s289
    $region4: #{tpu_custom_call.1} parent=1 // loop_header_branch
      %32 = sbr.rel (%p30) target = $region8
    $region5: #{tpu_custom_call.1} parent=1 // loop_body
      %s34 = ssub.s32 %s29, 1
      %s35 = ssub.s32 %s29, 2
      %s36 = sadd.s32 %s29, 1
      %s37 = ssub.s32 %s29, %s36
      %p38 = scmp.eq.s32.totalorder %s37, 0
      %s40 = sadd.s32 %s39, 1
      %s41 = scalar_select %p38, %s39, %s40
      %p44 = pneg %p38
      %p45 = scmp.eq.s32.totalorder %s29, 1
      %p46 = por %p44, %p45
      %p47 = scmp.ne.s32.totalorder %s39, %s42
      %p48 = scmp.eq.s32.totalorder %s29, 0
      %p49 = por %p47, %p48
      %p50 = scmp.ne.s32.totalorder %s39, %s42
      %p51 = scmp.eq.s32.totalorder %s34, 1
      %p52 = por %p50, %p51
      %p53 = scmp.ne.s32.totalorder %s42, %s43
      %p54 = scmp.eq.s32.totalorder %s34, 0
      %p55 = por %p53, %p54
      %p56 = scmp.ne.s32.totalorder %s42, %s43
      %p57 = scmp.eq.s32.totalorder %s35, 1
      %p58 = por %p56, %p57
      %p60 = scmp.ne.s32.totalorder %s43, %s59
      %p61 = scmp.eq.s32.totalorder %s35, 0
      %p62 = por %p60, %p61
      %s64 = sadd.s32 %s63, 1
      %p67 = scmp.eq.s32.totalorder %s29, 1
      %p68 = scmp.ne.s32.totalorder %s63, %s65
      %p69 = scmp.eq.s32.totalorder %s29, 0
      %p70 = por %p68, %p69
      %p71 = scmp.ne.s32.totalorder %s63, %s65
      %p72 = scmp.eq.s32.totalorder %s34, 1
      %p73 = por %p71, %p72
      %p74 = scmp.ne.s32.totalorder %s65, %s66
      %p75 = scmp.eq.s32.totalorder %s34, 0
      %p76 = por %p74, %p75
      %p77 = scmp.ne.s32.totalorder %s65, %s66
      %p78 = scmp.eq.s32.totalorder %s35, 1
      %p79 = por %p77, %p78
      %p81 = scmp.ne.s32.totalorder %s66, %s80
      %p82 = scmp.eq.s32.totalorder %s35, 0
      %p83 = por %p81, %p82
      %s85 = sadd.s32 %s84, 1
      %p88 = scmp.eq.s32.totalorder %s29, 1
      %p89 = scmp.ne.s32.totalorder %s84, %s86
      %p90 = scmp.eq.s32.totalorder %s29, 0
      %p91 = por %p89, %p90
      %p92 = scmp.ne.s32.totalorder %s84, %s86
      %p93 = scmp.eq.s32.totalorder %s34, 1
      %p94 = por %p92, %p93
      %p95 = scmp.ne.s32.totalorder %s86, %s87
      %p96 = scmp.eq.s32.totalorder %s34, 0
      %p97 = por %p95, %p96
      %p98 = scmp.ne.s32.totalorder %s86, %s87
      %p99 = scmp.eq.s32.totalorder %s35, 1
      %p100 = por %p98, %p99
      %p102 = scmp.ne.s32.totalorder %s87, %s101
      %p103 = scmp.eq.s32.totalorder %s35, 0
      %p104 = por %p102, %p103
      %s106 = sadd.s32 %s105, 1
      %p109 = scmp.eq.s32.totalorder %s29, 1
      %p110 = scmp.ne.s32.totalorder %s105, %s107
      %p111 = scmp.eq.s32.totalorder %s29, 0
      %p112 = por %p110, %p111
      %p113 = scmp.ne.s32.totalorder %s105, %s107
      %p114 = scmp.eq.s32.totalorder %s34, 1
      %p115 = por %p113, %p114
      %p116 = scmp.ne.s32.totalorder %s107, %s108
      %p117 = scmp.eq.s32.totalorder %s34, 0
      %p118 = por %p116, %p117
      %p119 = scmp.ne.s32.totalorder %s107, %s108
      %p120 = scmp.eq.s32.totalorder %s35, 1
      %p121 = por %p119, %p120
      %p123 = scmp.ne.s32.totalorder %s108, %s122
      %p124 = scmp.eq.s32.totalorder %s35, 0
      %p125 = por %p123, %p124
      %s127 = sadd.s32 %s126, 1
      %p130 = scmp.eq.s32.totalorder %s29, 1
      %p131 = scmp.ne.s32.totalorder %s126, %s128
      %p132 = scmp.eq.s32.totalorder %s29, 0
      %p133 = por %p131, %p132
      %p134 = scmp.ne.s32.totalorder %s126, %s128
      %p135 = scmp.eq.s32.totalorder %s34, 1
      %p136 = por %p134, %p135
      %p137 = scmp.ne.s32.totalorder %s128, %s129
      %p138 = scmp.eq.s32.totalorder %s34, 0
      %p139 = por %p137, %p138
      %p140 = scmp.ne.s32.totalorder %s128, %s129
      %p141 = scmp.eq.s32.totalorder %s35, 1
      %p142 = por %p140, %p141
      %p144 = scmp.ne.s32.totalorder %s129, %s143
      %p145 = scmp.eq.s32.totalorder %s35, 0
      %p146 = por %p144, %p145
      %s148 = sadd.s32 %s147, 1
      %p151 = scmp.eq.s32.totalorder %s29, 1
      %p152 = scmp.ne.s32.totalorder %s147, %s149
      %p153 = scmp.eq.s32.totalorder %s29, 0
      %p154 = por %p152, %p153
      %p155 = scmp.ne.s32.totalorder %s147, %s149
      %p156 = scmp.eq.s32.totalorder %s34, 1
      %p157 = por %p155, %p156
      %p158 = scmp.ne.s32.totalorder %s149, %s150
      %p159 = scmp.eq.s32.totalorder %s34, 0
      %p160 = por %p158, %p159
      %p161 = scmp.ne.s32.totalorder %s149, %s150
      %p162 = scmp.eq.s32.totalorder %s35, 1
      %p163 = por %p161, %p162
      %p165 = scmp.ne.s32.totalorder %s150, %s164
      %p166 = scmp.eq.s32.totalorder %s35, 0
      %p167 = por %p165, %p166
      %s169 = sadd.s32 %s168, 1
      %p172 = scmp.eq.s32.totalorder %s29, 1
      %p173 = scmp.ne.s32.totalorder %s168, %s170
      %p174 = scmp.eq.s32.totalorder %s29, 0
      %p175 = por %p173, %p174
      %p176 = scmp.ne.s32.totalorder %s168, %s170
      %p177 = scmp.eq.s32.totalorder %s34, 1
      %p178 = por %p176, %p177
      %p179 = scmp.ne.s32.totalorder %s170, %s171
      %p180 = scmp.eq.s32.totalorder %s34, 0
      %p181 = por %p179, %p180
      %p182 = scmp.ne.s32.totalorder %s170, %s171
      %p183 = scmp.eq.s32.totalorder %s35, 1
      %p184 = por %p182, %p183
      %p186 = scmp.ne.s32.totalorder %s171, %s185
      %p187 = scmp.eq.s32.totalorder %s35, 0
      %p188 = por %p186, %p187
      %s190 = sadd.s32 %s189, 1
      %p193 = scmp.eq.s32.totalorder %s29, 1
      %p194 = scmp.ne.s32.totalorder %s189, %s191
      %p195 = scmp.eq.s32.totalorder %s29, 0
      %p196 = por %p194, %p195
      %p197 = scmp.ne.s32.totalorder %s189, %s191
      %p198 = scmp.eq.s32.totalorder %s34, 1
      %p199 = por %p197, %p198
      %p200 = scmp.ne.s32.totalorder %s191, %s192
      %p201 = scmp.eq.s32.totalorder %s34, 0
      %p202 = por %p200, %p201
      %p203 = scmp.ne.s32.totalorder %s191, %s192
      %p204 = scmp.eq.s32.totalorder %s35, 1
      %p205 = por %p203, %p204
      %p207 = scmp.ne.s32.totalorder %s192, %s206
      %p208 = scmp.eq.s32.totalorder %s35, 0
      %p209 = por %p207, %p208
      %s211 = sadd.s32 %s210, 1
      %p214 = scmp.eq.s32.totalorder %s29, 1
      %p215 = scmp.ne.s32.totalorder %s210, %s212
      %p216 = scmp.eq.s32.totalorder %s29, 0
      %p217 = por %p215, %p216
      %p218 = scmp.ne.s32.totalorder %s210, %s212
      %p219 = scmp.eq.s32.totalorder %s34, 1
      %p220 = por %p218, %p219
      %p221 = scmp.ne.s32.totalorder %s212, %s213
      %p222 = scmp.eq.s32.totalorder %s34, 0
      %p223 = por %p221, %p222
      %p224 = scmp.ne.s32.totalorder %s212, %s213
      %p225 = scmp.eq.s32.totalorder %s35, 1
      %p226 = por %p224, %p225
      %p228 = scmp.ne.s32.totalorder %s213, %s227
      %p229 = scmp.eq.s32.totalorder %s35, 0
      %p230 = por %p228, %p229
      %s231 = ssub.s32 %s29, %s36
      %p232 = scmp.eq.s32.totalorder %s231, 0
      %s234 = sadd.s32 %s233, 1
      %s235 = scalar_select %p232, %s233, %s234
      %p238 = pneg %p232
      %p239 = scmp.eq.s32.totalorder %s29, 1
      %p240 = por %p238, %p239
      %p241 = scmp.ne.s32.totalorder %s233, %s236
      %p242 = scmp.eq.s32.totalorder %s29, 0
      %p243 = por %p241, %p242
      %p244 = scmp.ne.s32.totalorder %s233, %s236
      %p245 = scmp.eq.s32.totalorder %s34, 1
      %p246 = por %p244, %p245
      %p247 = scmp.ne.s32.totalorder %s236, %s237
      %p248 = scmp.eq.s32.totalorder %s34, 0
      %p249 = por %p247, %p248
      %p250 = scmp.ne.s32.totalorder %s236, %s237
      %p251 = scmp.eq.s32.totalorder %s35, 1
      %p252 = por %p250, %p251
      %p254 = scmp.ne.s32.totalorder %s237, %s253
      %p255 = scmp.eq.s32.totalorder %s35, 0
      %p256 = por %p254, %p255
      %s257 = ssub.s32 %s29, %s36
      %p258 = scmp.eq.s32.totalorder %s257, 0
      %s260 = sadd.s32 %s259, 1
      %s261 = scalar_select %p258, %s259, %s260
      %p264 = pneg %p258
      %p265 = scmp.eq.s32.totalorder %s29, 1
      %p266 = por %p264, %p265
      %p267 = scmp.ne.s32.totalorder %s259, %s262
      %p268 = scmp.eq.s32.totalorder %s29, 0
      %p269 = por %p267, %p268
      %p270 = scmp.ne.s32.totalorder %s259, %s262
      %p271 = scmp.eq.s32.totalorder %s34, 1
      %p272 = por %p270, %p271
      %p273 = scmp.ne.s32.totalorder %s262, %s263
      %p274 = scmp.eq.s32.totalorder %s34, 0
      %p275 = por %p273, %p274
      %p276 = scmp.ne.s32.totalorder %s262, %s263
      %p277 = scmp.eq.s32.totalorder %s35, 1
      %p278 = por %p276, %p277
      %p280 = scmp.ne.s32.totalorder %s263, %s279
      %p281 = scmp.eq.s32.totalorder %s35, 0
      %p282 = por %p280, %p281
      %s283 = ssub.s32 %s29, %s36
      %p284 = scmp.eq.s32.totalorder %s283, 0
      %s286 = sadd.s32 %s285, 1
      %s287 = scalar_select %p284, %s285, %s286
      %p290 = pneg %p284
      %p291 = scmp.eq.s32.totalorder %s29, 1
      %p292 = por %p290, %p291
      %p293 = scmp.ne.s32.totalorder %s285, %s288
      %p294 = scmp.eq.s32.totalorder %s29, 0
      %p295 = por %p293, %p294
      %p296 = scmp.ne.s32.totalorder %s285, %s288
      %p297 = scmp.eq.s32.totalorder %s34, 1
      %p298 = por %p296, %p297
      %p299 = scmp.ne.s32.totalorder %s288, %s289
      %p300 = scmp.eq.s32.totalorder %s34, 0
      %p301 = por %p299, %p300
      %p302 = scmp.ne.s32.totalorder %s288, %s289
      %p303 = scmp.eq.s32.totalorder %s35, 1
      %p304 = por %p302, %p303
      %p306 = scmp.ne.s32.totalorder %s289, %s305
      %p307 = scmp.eq.s32.totalorder %s35, 0
      %p308 = por %p306, %p307
      %p309 = scmp.le.s32.totalorder 1, %s29
      %p310 = scmp.lt.s32.totalorder %s29, 3
      %p311 = pnand %p309, %p310
      %p312 = pneg %p311
      // Predicated region
      $region9: #{tpu_custom_call.1} parent=5 // pred_check
        _
      $region10: #{tpu_custom_call.1} parent=5 // pred_check_branch
        %314 = sbr.rel (%p311) target = $region12
      $region11: #{tpu_custom_call.1} parent=5 // pred_region
        %s315 = ssub.s32 %s29, 1
        // Predicated region
        $region13: #{tpu_custom_call.1} parent=11 // pred_check
          %p316 = pneg %p76
        $region14: #{tpu_custom_call.1} parent=11 // pred_check_branch
          %318 = sbr.rel (%p316) target = $region16
        $region15: #{tpu_custom_call.1} parent=11 // pred_region
          %s320 = ssub.s32 256, 256
          %321 = vsyncadd [#allocation6], %s320
          %s322 = sshll.u32 [#allocation5], 4
          %s323 = int_to_ptr.vmem [resolvable:$true] %s322
          %328 = dma.hbm_to_vmem [thread:$0]  %s1, 256, %s323, [#allocation6], 64, 64, 4
        $region16: #{tpu_custom_call.1} parent=11 // pred_fallthru
          _
        // Predicated region
        $region17: #{tpu_custom_call.1} parent=11 // pred_check
          %p329 = pneg %p97
        $region18: #{tpu_custom_call.1} parent=11 // pred_check_branch
          %331 = sbr.rel (%p329) target = $region20
        $region19: #{tpu_custom_call.1} parent=11 // pred_region
          _
        $region20: #{tpu_custom_call.1} parent=11 // pred_fallthru
          _
        // Predicated region
        $region21: #{tpu_custom_call.1} parent=11 // pred_check
          %p332 = pneg %p118
        $region22: #{tpu_custom_call.1} parent=11 // pred_check_branch
          %334 = sbr.rel (%p332) target = $region24
        $region23: #{tpu_custom_call.1} parent=11 // pred_region
          %s336 = ssub.s32 1024, 1024
          %337 = vsyncadd [#allocation6], %s336
          %s338 = sshll.u32 [#allocation7], 4
          %s339 = int_to_ptr.vmem [resolvable:$true] %s338
          %344 = dma.hbm_to_vmem [thread:$0]  %s3, 1024, %s339, [#allocation6], 64, 64, 4
        $region24: #{tpu_custom_call.1} parent=11 // pred_fallthru
          _
        // Predicated region
        $region25: #{tpu_custom_call.1} parent=11 // pred_check
          %p345 = pneg %p139
        $region26: #{tpu_custom_call.1} parent=11 // pred_check_branch
          %347 = sbr.rel (%p345) target = $region28
        $region27: #{tpu_custom_call.1} parent=11 // pred_region
          _
        $region28: #{tpu_custom_call.1} parent=11 // pred_fallthru
          _
        // Predicated region
        $region29: #{tpu_custom_call.1} parent=11 // pred_check
          %p348 = pneg %p160
        $region30: #{tpu_custom_call.1} parent=11 // pred_check_branch
          %350 = sbr.rel (%p348) target = $region32
        $region31: #{tpu_custom_call.1} parent=11 // pred_region
          %s352 = ssub.s32 2048, 2048
          %353 = vsyncadd [#allocation9], %s352
          %s354 = sshll.u32 [#allocation8], 4
          %s355 = int_to_ptr.vmem [resolvable:$true] %s354
          %360 = dma.hbm_to_vmem [thread:$0]  %s5, 2048, %s355, [#allocation9], 128, 128, 8
        $region32: #{tpu_custom_call.1} parent=11 // pred_fallthru
          _
        // Predicated region
        $region33: #{tpu_custom_call.1} parent=11 // pred_check
          %p361 = pneg %p181
        $region34: #{tpu_custom_call.1} parent=11 // pred_check_branch
          %363 = sbr.rel (%p361) target = $region36
        $region35: #{tpu_custom_call.1} parent=11 // pred_region
          _
        $region36: #{tpu_custom_call.1} parent=11 // pred_fallthru
          _
        // Predicated region
        $region37: #{tpu_custom_call.1} parent=11 // pred_check
          %p364 = pneg %p202
        $region38: #{tpu_custom_call.1} parent=11 // pred_check_branch
          %366 = sbr.rel (%p364) target = $region40
        $region39: #{tpu_custom_call.1} parent=11 // pred_region
          %s368 = ssub.s32 1024, 1024
          %369 = vsyncadd [#allocation9], %s368
          %s370 = sshll.u32 [#allocation10], 4
          %s371 = int_to_ptr.vmem [resolvable:$true] %s370
          %376 = dma.hbm_to_vmem [thread:$0]  %s7, 1024, %s371, [#allocation9], 64, 64, 4
        $region40: #{tpu_custom_call.1} parent=11 // pred_fallthru
          _
        // Predicated region
        $region41: #{tpu_custom_call.1} parent=11 // pred_check
          %p377 = pneg %p223
        $region42: #{tpu_custom_call.1} parent=11 // pred_check_branch
          %379 = sbr.rel (%p377) target = $region44
        $region43: #{tpu_custom_call.1} parent=11 // pred_region
          _
        $region44: #{tpu_custom_call.1} parent=11 // pred_fallthru
          _
      $region12: #{tpu_custom_call.1} parent=5 // pred_fallthru
        _
      %p380 = scmp.lt.s32.totalorder %s29, 2
      // Predicated region
      $region45: #{tpu_custom_call.1} parent=5 // pred_check
        %p381 = pneg %p380
      $region46: #{tpu_custom_call.1} parent=5 // pred_check_branch
        %383 = sbr.rel (%p381) target = $region48
      $region47: #{tpu_custom_call.1} parent=5 // pred_region
        // Predicated region
        $region49: #{tpu_custom_call.1} parent=47 // pred_check
          %p384 = pneg %p49
        $region50: #{tpu_custom_call.1} parent=47 // pred_check_branch
          %386 = sbr.rel (%p384) target = $region52
        $region51: #{tpu_custom_call.1} parent=47 // pred_region
          %s387 = sand.u32 %s39, 1
          %s388 = scalar_lea.sflag [#allocation3], %s387
          %s389 = sand.u32 %s39, 1
          %s390 = smul.addr %s389, 8
          %s391 = scalar_lea.vmem [#allocation2], %s390
          %s393 = ssub.s32 128, 128
          %394 = vsyncadd %s388, %s393
          %s395 = smul.addr %s29, 128
          %s396 = scalar_lea.hbm %s0, %s395
          %s398 = sshll.u32 %s391, 4
          %s399 = int_to_ptr.vmem [resolvable:$true] %s398
          %401 = dma.hbm_to_vmem [thread:$0]  %s396, 128, %s399, %s388
        $region52: #{tpu_custom_call.1} parent=47 // pred_fallthru
          _
      $region48: #{tpu_custom_call.1} parent=5 // pred_fallthru
        _
      %p402 = scmp.le.s32.totalorder 1, %s29
      %p403 = scmp.lt.s32.totalorder %s29, 3
      %p404 = pnand %p402, %p403
      %p405 = pneg %p404
      // Predicated region
      $region53: #{tpu_custom_call.1} parent=5 // pred_check
        _
      $region54: #{tpu_custom_call.1} parent=5 // pred_check_branch
        %407 = sbr.rel (%p404) target = $region56
      $region55: #{tpu_custom_call.1} parent=5 // pred_region
        %s408 = ssub.s32 %s29, 1
        %s409 = sand.u32 %s42, 1
        %s410 = scalar_lea.sflag [#allocation3], %s409
        %s411 = sand.u32 %s42, 1
        %s412 = smul.addr %s411, 8
        %s413 = scalar_lea.vmem [#allocation2], %s412
        // Predicated region
        $region57: #{tpu_custom_call.1} parent=55 // pred_check
          %p414 = pneg %p55
        $region58: #{tpu_custom_call.1} parent=55 // pred_check_branch
          %416 = sbr.rel (%p414) target = $region60
        $region59: #{tpu_custom_call.1} parent=55 // pred_region
          %417 = dma.done %s410, 128
        $region60: #{tpu_custom_call.1} parent=55 // pred_fallthru
          _
        // Predicated region
        $region61: #{tpu_custom_call.1} parent=55 // pred_check
          %p418 = pneg %p76
        $region62: #{tpu_custom_call.1} parent=55 // pred_check_branch
          %420 = sbr.rel (%p418) target = $region64
        $region63: #{tpu_custom_call.1} parent=55 // pred_region
          %421 = dma.done [#allocation6], 256
        $region64: #{tpu_custom_call.1} parent=55 // pred_fallthru
          _
        // Predicated region
        $region65: #{tpu_custom_call.1} parent=55 // pred_check
          %p422 = pneg %p118
        $region66: #{tpu_custom_call.1} parent=55 // pred_check_branch
          %424 = sbr.rel (%p422) target = $region68
        $region67: #{tpu_custom_call.1} parent=55 // pred_region
          %425 = dma.done [#allocation6], 1024
        $region68: #{tpu_custom_call.1} parent=55 // pred_fallthru
          _
        // Predicated region
        $region69: #{tpu_custom_call.1} parent=55 // pred_check
          %p426 = pneg %p160
        $region70: #{tpu_custom_call.1} parent=55 // pred_check_branch
          %428 = sbr.rel (%p426) target = $region72
        $region71: #{tpu_custom_call.1} parent=55 // pred_region
          %429 = dma.done [#allocation9], 2048
        $region72: #{tpu_custom_call.1} parent=55 // pred_fallthru
          _
        // Predicated region
        $region73: #{tpu_custom_call.1} parent=55 // pred_check
          %p430 = pneg %p202
        $region74: #{tpu_custom_call.1} parent=55 // pred_check_branch
          %432 = sbr.rel (%p430) target = $region76
        $region75: #{tpu_custom_call.1} parent=55 // pred_region
          %433 = dma.done [#allocation9], 1024
        $region76: #{tpu_custom_call.1} parent=55 // pred_fallthru
          _
        %s434 = sand.u32 %s42, 1
        %s435 = scalar_lea.sflag [#allocation3], %s434
        %s436 = sand.u32 %s42, 1
        %s437 = smul.addr %s436, 8
        %s438 = scalar_lea.vmem [#allocation2], %s437
        %p439 = pneg %p55
        %p440 = pneg %p52
        %p441 = pneg %p76
        %p442 = pneg %p73
        %p443 = pneg %p97
        %p444 = pneg %p94
        %p445 = pneg %p118
        %p446 = pneg %p115
        %p447 = pneg %p139
        %p448 = pneg %p136
        %p449 = pneg %p160
        %p450 = pneg %p157
        %p451 = pneg %p181
        %p452 = pneg %p178
        %p453 = pneg %p202
        %p454 = pneg %p199
        %p455 = pneg %p223
        %p456 = pneg %p220
        %p457 = pneg %p249
        %p458 = pneg %p246
        %s459 = sand.u32 %s236, 1
        %s460 = scalar_lea.sflag [#allocation4], %s459
        %s461 = sand.u32 %s236, 1
        %s462 = smul.addr %s461, 4
        %s463 = scalar_lea.vmem [#allocation11], %s462
        %p464 = pneg %p275
        %p465 = pneg %p272
        %s466 = sand.u32 %s34, 1
        %s467 = scalar_lea.sflag [#allocation13], %s466
        %s468 = sand.u32 %s262, 1
        %s469 = smul.addr %s468, 4
        %s470 = scalar_lea.vmem [#allocation12], %s469
        %p471 = pneg %p301
        %p472 = pneg %p298
        %s473 = sand.u32 %s34, 1
        %s474 = scalar_lea.sflag [#allocation13], %s473
        %s475 = sand.u32 %s288, 1
        %s476 = smul.addr %s475, 4
        %s477 = scalar_lea.vmem [#allocation14], %s476
        %v479 = vld [vmem:[%s413] sm:$0xff]
        %v480 = vpack.c.bf16 %v479, %v479
        %v481 = vld [vmem:[#allocation5] sm:$0xf]
        %v482 = vld [vmem:[#allocation5 + $0x4] sm:$0xf]
        %v483 = vld [vmem:[#allocation5 + $0x8] sm:$0xf]
        %v484 = vld [vmem:[#allocation5 + $0xc] sm:$0xf]
        %v485 = vld [vmem:[%s2] sm:$0x1]
        %v487 = vlaneseq
        %v488 = vshrl.u32 %v487, 7
        %v489 = vsub.s32 0, %v488
        %v490 = vrot.slane %v485, %v489
        %v496 = vunpack.c.l.b16 %v481
        %v497 = vunpack.c.l.b16 %v482
        %v498 = vunpack.c.l.b16 %v483
        %v499 = vunpack.c.l.b16 %v484
        %v500 = vpack.c.b16 %v497, %v496
        %v501 = vpack.c.b16 %v499, %v498
        %vm504 = vcmask 261120
        %v506 = vsel %vm504, %v480, 0
        %508 = vmatprep.subr.bf16.mxu0 0
        %509 = vmatpush1.bf16.msra.mxu0 %v500
        %510 = vmatprep.subr.bf16.mxu0 0
        %511 = vmatpush1.bf16.msra.mxu0 %v501
        %512 = vmatprep.subr.bf16.mxu0 0
        %513 = vmatpush1.bf16.msra.mxu0 0
        %514 = vmatprep.subr.bf16.mxu0 0
        %515 = vmatpush1.bf16.msra.mxu0 0
        %516 = vmatprep.subr.bf16.mxu0 0
        %517 = vmatpush1.bf16.msra.mxu0 0
        %518 = vmatprep.subr.bf16.mxu0 0
        %519 = vmatpush1.bf16.msra.mxu0 0
        %520 = vmatprep.subr.bf16.mxu0 0
        %521 = vmatpush1.bf16.msra.mxu0 0
        %522 = vmatprep.subr.bf16.mxu0 0
        %523 = vmatpush1.bf16.msra.mxu0 0
        %524 = vmatprep.subr.bf16.mxu0 0
        %525 = vmatpush1.bf16.msra.mxu0 0
        %526 = vmatprep.subr.bf16.mxu0 0
        %527 = vmatpush1.bf16.msra.mxu0 0
        %528 = vmatprep.subr.bf16.mxu0 0
        %529 = vmatpush1.bf16.msra.mxu0 0
        %530 = vmatprep.subr.bf16.mxu0 0
        %531 = vmatpush1.bf16.msra.mxu0 0
        %532 = vmatprep.subr.bf16.mxu0 0
        %533 = vmatpush1.bf16.msra.mxu0 0
        %534 = vmatprep.subr.bf16.mxu0 0
        %535 = vmatpush1.bf16.msra.mxu0 0
        %536 = vmatprep.subr.bf16.mxu0 0
        %537 = vmatpush1.bf16.msra.mxu0 0
        %538 = vmatprep.subr.bf16.mxu0 0
        %539 = vmatpush1.bf16.msra.mxu0 0
        %540 = vmatprep.mubr.bf16.mxu0 0
        %541 = vmatmul.mubr.bf16.gmra.mrb[0].mxu0 %v506
        %v542 = vpop.f32.mrb[0].mxu0
        %v543 = vadd.f32 %v490, %v542
        %v544 = vpop.f32.mrb[0].mxu0
        %v545 = vpop.f32.mrb[0].mxu0
        %v546 = vpop.f32.mrb[0].mxu0
        %547 = vdwg.mxu0
        %v548 = vmax.f32 %v543, 0.0
        %v549 = vpack.c.bf16 %v548, %v548
        %v550 = vld [vmem:[#allocation7] sm:$0xf]
        %v551 = vld [vmem:[#allocation7 + $0x4] sm:$0xf]
        %v552 = vld [vmem:[#allocation7 + $0x8] sm:$0xf]
        %v553 = vld [vmem:[#allocation7 + $0xc] sm:$0xf]
        %v554 = vld [vmem:[#allocation7 + $0x10] sm:$0xf]
        %v555 = vld [vmem:[#allocation7 + $0x14] sm:$0xf]
        %v556 = vld [vmem:[#allocation7 + $0x18] sm:$0xf]
        %v557 = vld [vmem:[#allocation7 + $0x1c] sm:$0xf]
        %v558 = vld [vmem:[#allocation7 + $0x20] sm:$0xf]
        %v559 = vld [vmem:[#allocation7 + $0x24] sm:$0xf]
        %v560 = vld [vmem:[#allocation7 + $0x28] sm:$0xf]
        %v561 = vld [vmem:[#allocation7 + $0x2c] sm:$0xf]
        %v562 = vld [vmem:[#allocation7 + $0x30] sm:$0xf]
        %v563 = vld [vmem:[#allocation7 + $0x34] sm:$0xf]
        %v564 = vld [vmem:[#allocation7 + $0x38] sm:$0xf]
        %v565 = vld [vmem:[#allocation7 + $0x3c] sm:$0xf]
        %v566 = vld [vmem:[%s4] sm:$0x1]
        %v568 = vlaneseq
        %v569 = vshrl.u32 %v568, 7
        %v570 = vsub.s32 0, %v569
        %v571 = vrot.slane %v566, %v570
        %v589 = vunpack.c.l.b16 %v550
        %v590 = vunpack.c.l.b16 %v551
        %v591 = vunpack.c.l.b16 %v552
        %v592 = vunpack.c.l.b16 %v553
        %v593 = vunpack.c.l.b16 %v554
        %v594 = vunpack.c.l.b16 %v555
        %v595 = vunpack.c.l.b16 %v556
        %v596 = vunpack.c.l.b16 %v557
        %v597 = vunpack.c.l.b16 %v558
        %v598 = vunpack.c.l.b16 %v559
        %v599 = vunpack.c.l.b16 %v560
        %v600 = vunpack.c.l.b16 %v561
        %v601 = vunpack.c.l.b16 %v562
        %v602 = vunpack.c.l.b16 %v563
        %v603 = vunpack.c.l.b16 %v564
        %v604 = vunpack.c.l.b16 %v565
        %v605 = vpack.c.b16 %v590, %v589
        %v606 = vpack.c.b16 %v592, %v591
        %v607 = vpack.c.b16 %v594, %v593
        %v608 = vpack.c.b16 %v596, %v595
        %v609 = vpack.c.b16 %v598, %v597
        %v610 = vpack.c.b16 %v600, %v599
        %v611 = vpack.c.b16 %v602, %v601
        %v612 = vpack.c.b16 %v604, %v603
        %621 = vmatprep.subr.bf16.mxu0 0
        %622 = vmatpush1.bf16.msra.mxu0 %v605
        %623 = vmatprep.subr.bf16.mxu0 0
        %624 = vmatpush1.bf16.msra.mxu0 %v606
        %625 = vmatprep.subr.bf16.mxu0 0
        %626 = vmatpush1.bf16.msra.mxu0 %v607
        %627 = vmatprep.subr.bf16.mxu0 0
        %628 = vmatpush1.bf16.msra.mxu0 %v608
        %629 = vmatprep.subr.bf16.mxu0 0
        %630 = vmatpush1.bf16.msra.mxu0 %v609
        %631 = vmatprep.subr.bf16.mxu0 0
        %632 = vmatpush1.bf16.msra.mxu0 %v610
        %633 = vmatprep.subr.bf16.mxu0 0
        %634 = vmatpush1.bf16.msra.mxu0 %v611
        %635 = vmatprep.subr.bf16.mxu0 0
        %636 = vmatpush1.bf16.msra.mxu0 %v612
        %637 = vmatprep.subr.bf16.mxu0 0
        %638 = vmatpush1.bf16.msra.mxu0 0
        %639 = vmatprep.subr.bf16.mxu0 0
        %640 = vmatpush1.bf16.msra.mxu0 0
        %641 = vmatprep.subr.bf16.mxu0 0
        %642 = vmatpush1.bf16.msra.mxu0 0
        %643 = vmatprep.subr.bf16.mxu0 0
        %644 = vmatpush1.bf16.msra.mxu0 0
        %645 = vmatprep.subr.bf16.mxu0 0
        %646 = vmatpush1.bf16.msra.mxu0 0
        %647 = vmatprep.subr.bf16.mxu0 0
        %648 = vmatpush1.bf16.msra.mxu0 0
        %649 = vmatprep.subr.bf16.mxu0 0
        %650 = vmatpush1.bf16.msra.mxu0 0
        %651 = vmatprep.subr.bf16.mxu0 0
        %652 = vmatpush1.bf16.msra.mxu0 0
        %653 = vmatprep.mubr.bf16.mxu0 0
        %654 = vmatmul.mubr.bf16.gmra.mrb[0].mxu0 %v549
        %v655 = vpop.f32.mrb[0].mxu0
        %v656 = vadd.f32 %v571, %v655
        %v657 = vpop.f32.mrb[0].mxu0
        %v658 = vpop.f32.mrb[0].mxu0
        %v659 = vpop.f32.mrb[0].mxu0
        %660 = vdwg.mxu0
        %v661 = vmax.f32 %v656, 0.0
        %v662 = vpack.c.bf16 %v661, %v661
        %v663 = vld [vmem:[#allocation8] sm:$0xff]
        %v664 = vld [vmem:[#allocation8 + $0x8] sm:$0xff]
        %v665 = vld [vmem:[#allocation8 + $0x10] sm:$0xff]
        %v666 = vld [vmem:[#allocation8 + $0x18] sm:$0xff]
        %v667 = vld [vmem:[#allocation8 + $0x20] sm:$0xff]
        %v668 = vld [vmem:[#allocation8 + $0x28] sm:$0xff]
        %v669 = vld [vmem:[#allocation8 + $0x30] sm:$0xff]
        %v670 = vld [vmem:[#allocation8 + $0x38] sm:$0xff]
        %v671 = vld [vmem:[#allocation8 + $0x40] sm:$0xff]
        %v672 = vld [vmem:[#allocation8 + $0x48] sm:$0xff]
        %v673 = vld [vmem:[#allocation8 + $0x50] sm:$0xff]
        %v674 = vld [vmem:[#allocation8 + $0x58] sm:$0xff]
        %v675 = vld [vmem:[#allocation8 + $0x60] sm:$0xff]
        %v676 = vld [vmem:[#allocation8 + $0x68] sm:$0xff]
        %v677 = vld [vmem:[#allocation8 + $0x70] sm:$0xff]
        %v678 = vld [vmem:[#allocation8 + $0x78] sm:$0xff]
        %v679 = vld [vmem:[%s6] sm:$0x3]
        %v681 = vlaneseq
        %v682 = vshrl.u32 %v681, 7
        %v683 = vsub.s32 0, %v682
        %v684 = vrot.slane %v679, %v683
        %v685 = vlaneseq
        %v686 = vshrl.u32 %v685, 7
        %v687 = vsub.s32 1, %v686
        %v688 = vrot.slane %v679, %v687
        %v707 = vunpack.c.l.b16 %v663
        %v708 = vunpack.c.h.b16 %v663
        %v709 = vunpack.c.l.b16 %v664
        %v710 = vunpack.c.h.b16 %v664
        %v711 = vunpack.c.l.b16 %v665
        %v712 = vunpack.c.h.b16 %v665
        %v713 = vunpack.c.l.b16 %v666
        %v714 = vunpack.c.h.b16 %v666
        %v715 = vunpack.c.l.b16 %v667
        %v716 = vunpack.c.h.b16 %v667
        %v717 = vunpack.c.l.b16 %v668
        %v718 = vunpack.c.h.b16 %v668
        %v719 = vunpack.c.l.b16 %v669
        %v720 = vunpack.c.h.b16 %v669
        %v721 = vunpack.c.l.b16 %v670
        %v722 = vunpack.c.h.b16 %v670
        %v723 = vunpack.c.l.b16 %v671
        %v724 = vunpack.c.h.b16 %v671
        %v725 = vunpack.c.l.b16 %v672
        %v726 = vunpack.c.h.b16 %v672
        %v727 = vunpack.c.l.b16 %v673
        %v728 = vunpack.c.h.b16 %v673
        %v729 = vunpack.c.l.b16 %v674
        %v730 = vunpack.c.h.b16 %v674
        %v731 = vunpack.c.l.b16 %v675
        %v732 = vunpack.c.h.b16 %v675
        %v733 = vunpack.c.l.b16 %v676
        %v734 = vunpack.c.h.b16 %v676
        %v735 = vunpack.c.l.b16 %v677
        %v736 = vunpack.c.h.b16 %v677
        %v737 = vunpack.c.l.b16 %v678
        %v738 = vunpack.c.h.b16 %v678
        %v739 = vpack.c.b16 %v709, %v707
        %v740 = vpack.c.b16 %v710, %v708
        %v741 = vpack.c.b16 %v713, %v711
        %v742 = vpack.c.b16 %v714, %v712
        %v743 = vpack.c.b16 %v717, %v715
        %v744 = vpack.c.b16 %v718, %v716
        %v745 = vpack.c.b16 %v721, %v719
        %v746 = vpack.c.b16 %v722, %v720
        %v747 = vpack.c.b16 %v725, %v723
        %v748 = vpack.c.b16 %v726, %v724
        %v749 = vpack.c.b16 %v729, %v727
        %v750 = vpack.c.b16 %v730, %v728
        %v751 = vpack.c.b16 %v733, %v731
        %v752 = vpack.c.b16 %v734, %v732
        %v753 = vpack.c.b16 %v737, %v735
        %v754 = vpack.c.b16 %v738, %v736
        %771 = vmatprep.subr.bf16.mxu0 %v740
        %772 = vmatpush1.bf16.msra.mxu0 %v739
        %773 = vmatprep.subr.bf16.mxu0 %v742
        %774 = vmatpush1.bf16.msra.mxu0 %v741
        %775 = vmatprep.subr.bf16.mxu0 %v744
        %776 = vmatpush1.bf16.msra.mxu0 %v743
        %777 = vmatprep.subr.bf16.mxu0 %v746
        %778 = vmatpush1.bf16.msra.mxu0 %v745
        %779 = vmatprep.subr.bf16.mxu0 %v748
        %780 = vmatpush1.bf16.msra.mxu0 %v747
        %781 = vmatprep.subr.bf16.mxu0 %v750
        %782 = vmatpush1.bf16.msra.mxu0 %v749
        %783 = vmatprep.subr.bf16.mxu0 %v752
        %784 = vmatpush1.bf16.msra.mxu0 %v751
        %785 = vmatprep.subr.bf16.mxu0 %v754
        %786 = vmatpush1.bf16.msra.mxu0 %v753
        %787 = vmatprep.subr.bf16.mxu0 0
        %788 = vmatpush1.bf16.msra.mxu0 0
        %789 = vmatprep.subr.bf16.mxu0 0
        %790 = vmatpush1.bf16.msra.mxu0 0
        %791 = vmatprep.subr.bf16.mxu0 0
        %792 = vmatpush1.bf16.msra.mxu0 0
        %793 = vmatprep.subr.bf16.mxu0 0
        %794 = vmatpush1.bf16.msra.mxu0 0
        %795 = vmatprep.subr.bf16.mxu0 0
        %796 = vmatpush1.bf16.msra.mxu0 0
        %797 = vmatprep.subr.bf16.mxu0 0
        %798 = vmatpush1.bf16.msra.mxu0 0
        %799 = vmatprep.subr.bf16.mxu0 0
        %800 = vmatpush1.bf16.msra.mxu0 0
        %801 = vmatprep.subr.bf16.mxu0 0
        %802 = vmatpush1.bf16.msra.mxu0 0
        %803 = vmatprep.mubr.bf16.mxu0 0
        %804 = vmatmul.mubr.bf16.gmra.mrb[0].mxu0 %v662
        %v805 = vpop.f32.mrb[0].mxu0
        %v806 = vadd.f32 %v684, %v805
        %v807 = vpop.f32.mrb[0].mxu0
        %v808 = vadd.f32 %v688, %v807
        %v809 = vpop.f32.mrb[0].mxu0
        %v810 = vpop.f32.mrb[0].mxu0
        %811 = vdwg.mxu0
        %v812 = vmax.f32 %v806, 0.0
        %v813 = vpack.c.bf16 %v812, %v812
        %v814 = vld [vmem:[#allocation10] sm:$0xf]
        %v815 = vld [vmem:[#allocation10 + $0x4] sm:$0xf]
        %v816 = vld [vmem:[#allocation10 + $0x8] sm:$0xf]
        %v817 = vld [vmem:[#allocation10 + $0xc] sm:$0xf]
        %v818 = vld [vmem:[#allocation10 + $0x10] sm:$0xf]
        %v819 = vld [vmem:[#allocation10 + $0x14] sm:$0xf]
        %v820 = vld [vmem:[#allocation10 + $0x18] sm:$0xf]
        %v821 = vld [vmem:[#allocation10 + $0x1c] sm:$0xf]
        %v822 = vld [vmem:[#allocation10 + $0x20] sm:$0xf]
        %v823 = vld [vmem:[#allocation10 + $0x24] sm:$0xf]
        %v824 = vld [vmem:[#allocation10 + $0x28] sm:$0xf]
        %v825 = vld [vmem:[#allocation10 + $0x2c] sm:$0xf]
        %v826 = vld [vmem:[#allocation10 + $0x30] sm:$0xf]
        %v827 = vld [vmem:[#allocation10 + $0x34] sm:$0xf]
        %v828 = vld [vmem:[#allocation10 + $0x38] sm:$0xf]
        %v829 = vld [vmem:[#allocation10 + $0x3c] sm:$0xf]
        %v830 = vld [vmem:[%s8] sm:$0x1]
        %v832 = vlaneseq
        %v833 = vshrl.u32 %v832, 7
        %v834 = vsub.s32 0, %v833
        %v835 = vrot.slane %v830, %v834
        %v853 = vunpack.c.l.b16 %v814
        %v854 = vunpack.c.l.b16 %v815
        %v855 = vunpack.c.l.b16 %v816
        %v856 = vunpack.c.l.b16 %v817
        %v857 = vunpack.c.l.b16 %v818
        %v858 = vunpack.c.l.b16 %v819
        %v859 = vunpack.c.l.b16 %v820
        %v860 = vunpack.c.l.b16 %v821
        %v861 = vunpack.c.l.b16 %v822
        %v862 = vunpack.c.l.b16 %v823
        %v863 = vunpack.c.l.b16 %v824
        %v864 = vunpack.c.l.b16 %v825
        %v865 = vunpack.c.l.b16 %v826
        %v866 = vunpack.c.l.b16 %v827
        %v867 = vunpack.c.l.b16 %v828
        %v868 = vunpack.c.l.b16 %v829
        %v869 = vpack.c.b16 %v854, %v853
        %v870 = vpack.c.b16 %v856, %v855
        %v871 = vpack.c.b16 %v858, %v857
        %v872 = vpack.c.b16 %v860, %v859
        %v873 = vpack.c.b16 %v862, %v861
        %v874 = vpack.c.b16 %v864, %v863
        %v875 = vpack.c.b16 %v866, %v865
        %v876 = vpack.c.b16 %v868, %v867
        %885 = vmatprep.subr.bf16.mxu0 0
        %886 = vmatpush1.bf16.msra.mxu0 %v869
        %887 = vmatprep.subr.bf16.mxu0 0
        %888 = vmatpush1.bf16.msra.mxu0 %v870
        %889 = vmatprep.subr.bf16.mxu0 0
        %890 = vmatpush1.bf16.msra.mxu0 %v871
        %891 = vmatprep.subr.bf16.mxu0 0
        %892 = vmatpush1.bf16.msra.mxu0 %v872
        %893 = vmatprep.subr.bf16.mxu0 0
        %894 = vmatpush1.bf16.msra.mxu0 %v873
        %895 = vmatprep.subr.bf16.mxu0 0
        %896 = vmatpush1.bf16.msra.mxu0 %v874
        %897 = vmatprep.subr.bf16.mxu0 0
        %898 = vmatpush1.bf16.msra.mxu0 %v875
        %899 = vmatprep.subr.bf16.mxu0 0
        %900 = vmatpush1.bf16.msra.mxu0 %v876
        %901 = vmatprep.subr.bf16.mxu0 0
        %902 = vmatpush1.bf16.msra.mxu0 0
        %903 = vmatprep.subr.bf16.mxu0 0
        %904 = vmatpush1.bf16.msra.mxu0 0
        %905 = vmatprep.subr.bf16.mxu0 0
        %906 = vmatpush1.bf16.msra.mxu0 0
        %907 = vmatprep.subr.bf16.mxu0 0
        %908 = vmatpush1.bf16.msra.mxu0 0
        %909 = vmatprep.subr.bf16.mxu0 0
        %910 = vmatpush1.bf16.msra.mxu0 0
        %911 = vmatprep.subr.bf16.mxu0 0
        %912 = vmatpush1.bf16.msra.mxu0 0
        %913 = vmatprep.subr.bf16.mxu0 0
        %914 = vmatpush1.bf16.msra.mxu0 0
        %915 = vmatprep.subr.bf16.mxu0 0
        %916 = vmatpush1.bf16.msra.mxu0 0
        %917 = vmatprep.mubr.bf16.mxu0 0
        %918 = vmatmul.mubr.bf16.gmra.mrb[0].mxu0 %v813
        %v919 = vpop.f32.mrb[0].mxu0
        %v920 = vadd.f32 %v835, %v919
        %v921 = vpop.f32.mrb[0].mxu0
        %v922 = vpop.f32.mrb[0].mxu0
        %v923 = vpop.f32.mrb[0].mxu0
        %924 = vdwg.mxu0
        %v925 = vpack.c.bf16 %v920, %v920
        %926 = vst [vmem:[%s463] sm:$0xf] %v925
        %927 = vst [vmem:[%s470] sm:$0xf] %v662
        %v928 = vpack.c.bf16 %v808, %v808
        %929 = vst [vmem:[%s477] sm:$0xf] %v928
        %s930 = sand.u32 %s236, 1
        %s931 = scalar_lea.sflag [#allocation4], %s930
        %s932 = sand.u32 %s236, 1
        %s933 = smul.addr %s932, 4
        %s934 = scalar_lea.vmem [#allocation11], %s933
        %s935 = sand.u32 %s34, 1
        %s936 = scalar_lea.sflag [#allocation13], %s935
        %s937 = sand.u32 %s262, 1
        %s938 = smul.addr %s937, 4
        %s939 = scalar_lea.vmem [#allocation12], %s938
        %s940 = sand.u32 %s34, 1
        %s941 = scalar_lea.sflag [#allocation13], %s940
        %s942 = sand.u32 %s288, 1
        %s943 = smul.addr %s942, 4
        %s944 = scalar_lea.vmem [#allocation14], %s943
        // Predicated region
        $region77: #{tpu_custom_call.1} parent=55 // pred_check
          %p945 = pneg %p246
        $region78: #{tpu_custom_call.1} parent=55 // pred_check_branch
          %947 = sbr.rel (%p945) target = $region80
        $region79: #{tpu_custom_call.1} parent=55 // pred_region
          %s949 = ssub.s32 64, 64
          %950 = vsyncadd %s931, %s949
          %s951 = smul.addr %s34, 64
          %s952 = scalar_lea.hbm %s9, %s951
          %s954 = sshll.u32 %s934, 4
          %s955 = int_to_ptr.vmem [resolvable:$true] %s954
          %957 = dma.vmem_to_hbm [thread:$0]  %s955, 64, %s952, %s931
        $region80: #{tpu_custom_call.1} parent=55 // pred_fallthru
          _
        // Predicated region
        $region81: #{tpu_custom_call.1} parent=55 // pred_check
          %p958 = pneg %p272
        $region82: #{tpu_custom_call.1} parent=55 // pred_check_branch
          %960 = sbr.rel (%p958) target = $region84
        $region83: #{tpu_custom_call.1} parent=55 // pred_region
          %s962 = ssub.s32 64, 64
          %963 = vsyncadd %s936, %s962
          %s964 = smul.addr %s34, 64
          %s965 = scalar_lea.hbm %s10, %s964
          %s967 = sshll.u32 %s939, 4
          %s968 = int_to_ptr.vmem [resolvable:$true] %s967
          %970 = dma.vmem_to_hbm [thread:$0]  %s968, 64, %s965, %s936
        $region84: #{tpu_custom_call.1} parent=55 // pred_fallthru
          _
        // Predicated region
        $region85: #{tpu_custom_call.1} parent=55 // pred_check
          %p971 = pneg %p298
        $region86: #{tpu_custom_call.1} parent=55 // pred_check_branch
          %973 = sbr.rel (%p971) target = $region88
        $region87: #{tpu_custom_call.1} parent=55 // pred_region
          %s975 = ssub.s32 64, 64
          %976 = vsyncadd %s941, %s975
          %s977 = smul.addr %s34, 64
          %s978 = scalar_lea.hbm %s11, %s977
          %s980 = sshll.u32 %s944, 4
          %s981 = int_to_ptr.vmem [resolvable:$true] %s980
          %983 = dma.vmem_to_hbm [thread:$0]  %s981, 64, %s978, %s941
        $region88: #{tpu_custom_call.1} parent=55 // pred_fallthru
          _
      $region56: #{tpu_custom_call.1} parent=5 // pred_fallthru
        _
      %p984 = scmp.le.s32.totalorder 2, %s29
      // Predicated region
      $region89: #{tpu_custom_call.1} parent=5 // pred_check
        %p985 = pneg %p984
      $region90: #{tpu_custom_call.1} parent=5 // pred_check_branch
        %987 = sbr.rel (%p985) target = $region92
      $region91: #{tpu_custom_call.1} parent=5 // pred_region
        %s988 = ssub.s32 %s29, 2
        // Predicated region
        $region93: #{tpu_custom_call.1} parent=91 // pred_check
          %p989 = pneg %p252
        $region94: #{tpu_custom_call.1} parent=91 // pred_check_branch
          %991 = sbr.rel (%p989) target = $region96
        $region95: #{tpu_custom_call.1} parent=91 // pred_region
          %s992 = sand.u32 %s237, 1
          %s993 = scalar_lea.sflag [#allocation4], %s992
          %s994 = sand.u32 %s237, 1
          %s995 = smul.addr %s994, 4
          %s996 = scalar_lea.vmem [#allocation11], %s995
          %997 = dma.done %s993, 64
        $region96: #{tpu_custom_call.1} parent=91 // pred_fallthru
          _
        // Predicated region
        $region97: #{tpu_custom_call.1} parent=91 // pred_check
          %p998 = pneg %p278
        $region98: #{tpu_custom_call.1} parent=91 // pred_check_branch
          %1000 = sbr.rel (%p998) target = $region100
        $region99: #{tpu_custom_call.1} parent=91 // pred_region
          %s1001 = sand.u32 %s35, 1
          %s1002 = scalar_lea.sflag [#allocation13], %s1001
          %s1003 = sand.u32 %s263, 1
          %s1004 = smul.addr %s1003, 4
          %s1005 = scalar_lea.vmem [#allocation12], %s1004
          %1006 = dma.done %s1002, 64
        $region100: #{tpu_custom_call.1} parent=91 // pred_fallthru
          _
        // Predicated region
        $region101: #{tpu_custom_call.1} parent=91 // pred_check
          %p1007 = pneg %p304
        $region102: #{tpu_custom_call.1} parent=91 // pred_check_branch
          %1009 = sbr.rel (%p1007) target = $region104
        $region103: #{tpu_custom_call.1} parent=91 // pred_region
          %s1010 = sand.u32 %s35, 1
          %s1011 = scalar_lea.sflag [#allocation13], %s1010
          %s1012 = sand.u32 %s289, 1
          %s1013 = smul.addr %s1012, 4
          %s1014 = scalar_lea.vmem [#allocation14], %s1013
          %1015 = dma.done %s1011, 64
        $region104: #{tpu_custom_call.1} parent=91 // pred_fallthru
          _
      $region92: #{tpu_custom_call.1} parent=5 // pred_fallthru
        _
    $region6: #{tpu_custom_call.1} parent=1 // loop_footer
      %s33 = sadd.s32 1, %s29
    $region7: #{tpu_custom_call.1} parent=1 // loop_footer_branch
      %28 = sbr.rel target = $region3
    $region8: #{tpu_custom_call.1} parent=1 // loop_exit
      _
    %1016 = vsyncpa [#allocation3], 1
    %s1017 = scalar_lea.sflag [#allocation3], 1
    %1018 = vsyncpa %s1017, 1
    %1019 = vsyncpa [#allocation6], 1
    %1020 = vsyncpa [#allocation9], 1
    %1021 = vsyncpa [#allocation4], 1
    %s1022 = scalar_lea.sflag [#allocation4], 1
    %1023 = vsyncpa %s1022, 1
    %1024 = vsyncpa [#allocation13], 1
    %s1025 = scalar_lea.sflag [#allocation13], 1
    %1026 = vsyncpa %s1025, 1

</llo_original>
